<compile_context>
chip_gen: v6e
topology: v6e:2x2x1
jax: 0.10.0
libtpu: 0.0.40
codegen_flags: <defaults>
</compile_context>

<pallas_src>
import jax
import jax.numpy as jnp
from jax.experimental import pallas as pl
from jax.experimental.pallas import tpu as pltpu


def _scale_rows_kernel(x_ref, s_ref, o_ref):
    # x_ref: (row_tile, col_tile) in x.dtype
    # s_ref: (row_tile, 1) in f32 -> broadcasts along the lane dim
    # o_ref: (row_tile, col_tile) in promoted output dtype
    o_ref[...] = (x_ref[...] * s_ref[...]).astype(o_ref.dtype)


def _choose_tiles(rows: int, cols: int, itemsize: int):
    """Pick (row_tile, col_tile) obeying the (8, 128)/full-extent rule,
    targeting ~2 MiB per input block."""
    target_bytes = 2 * 1024 * 1024

    # Lane (last-dim) tile: full extent when modest, otherwise a large
    # multiple of 128 (ragged tail blocks are masked by Pallas).
    if cols <= 4096:
        col_tile = cols
    else:
        col_tile = 2048

    # Sublane (row) tile: multiple of 8, or the full extent.
    want = max(1, target_bytes // max(1, col_tile * itemsize))
    if rows <= 8 or want >= rows:
        row_tile = rows
    else:
        row_tile = max(8, (min(want, rows) // 8) * 8)
    return row_tile, col_tile


def scale3d(x: jax.Array, scale: jax.Array) -> jax.Array:
    """Apply per-channel scaling to a (N, C, D, H, W) tensor.

    `scale` may be (C,) or (1, C, 1, 1, 1); it is kept in f32 so the
    learnable parameter is never quantized before the multiply.
    """
    N, C, D, H, W = x.shape
    rows = N * C
    cols = D * H * W

    # Lane-dense 2-D views (metadata-only reshapes on contiguous layout).
    x2d = x.reshape(rows, cols)
    scale_rows = jnp.broadcast_to(scale.reshape(1, C), (N, C)).reshape(rows, 1)

    out_dtype = jnp.result_type(x.dtype, scale.dtype)
    row_tile, col_tile = _choose_tiles(rows, cols, jnp.dtype(x.dtype).itemsize)
    grid = (pl.cdiv(rows, row_tile), pl.cdiv(cols, col_tile))

    out2d = pl.pallas_call(
        _scale_rows_kernel,
        out_shape=jax.ShapeDtypeStruct((rows, cols), out_dtype),
        grid=grid,
        in_specs=[
            pl.BlockSpec((row_tile, col_tile), lambda i, j: (i, j)),
            pl.BlockSpec((row_tile, 1), lambda i, j: (i, 0)),
        ],
        out_specs=pl.BlockSpec((row_tile, col_tile), lambda i, j: (i, j)),
        compiler_params=pltpu.CompilerParams(
            # Fully independent tiles: let the megacore shard both axes.
            dimension_semantics=("parallel", "parallel"),
            # ~2 MiB blocks double-buffered (in + out) need < 12 MiB; request
            # 32 MiB so the same tiling works unchanged on v5e/v6e/v7x.
            vmem_limit_bytes=32 * 1024 * 1024,
        ),
    )(x2d, scale_rows)

    return out2d.reshape(N, C, D, H, W)


class Scale3DLayerPallas:
    """Mirror of the PyTorch Scale3DLayer (deterministic init, no checkpoint)."""

    def __init__(self, channels: int, initial: float = 1.0):
        # torch.empty((1, C, 1, 1, 1)).fill_(initial)
        self.scale = jnp.full((1, channels, 1, 1, 1), initial, dtype=jnp.float32)

    def __call__(self, x: jax.Array) -> jax.Array:
        return scale3d(x, self.scale)


if __name__ == "__main__":
    key = jax.random.PRNGKey(0)
    N, C, D, H, W = 2, 4, 4, 8, 16
    x = jax.random.normal(key, (N, C, D, H, W), dtype=jnp.float32)

    layer = Scale3DLayerPallas(channels=C, initial=1.0)
    # Non-trivial per-channel scale so the broadcast multiply is exercised.
    layer.scale = jnp.arange(1, C + 1, dtype=jnp.float32).reshape(1, C, 1, 1, 1) * 0.5

    y = layer(x)
    jax.block_until_ready(y)

    y_ref = x * layer.scale  # plain-JAX reference (broadcast multiply)
    assert y.shape == x.shape
    assert y.dtype == y_ref.dtype
    assert jnp.allclose(y, y_ref, atol=1e-6, rtol=1e-6)

    print("KERNEL_OK")
</pallas_src>

<mosaic_0001>
module attributes {stable_mosaic.version = 11 : i64} {
  func.func @_scale_rows_kernel(%arg0: i32, %arg1: i32, %arg2: memref<8x512xf32, #tpu.memory_space<vmem>>, %arg3: memref<8x1xf32, #tpu.memory_space<vmem>>, %arg4: memref<8x512xf32, #tpu.memory_space<vmem>>) attributes {dimension_semantics = [#tpu.dimension_semantics<parallel>, #tpu.dimension_semantics<parallel>], iteration_bounds = array<i64: 1, 1>, scalar_prefetch = 0 : i64, scratch_operands = 0 : i64, tpu.core_type = #tpu.core_type<tc>, window_params = [{transform_indices = @transform_0, window_bounds = array<i64: 8, 512>}, {transform_indices = @transform_1, window_bounds = array<i64: 8, 1>}, {transform_indices = @transform_2, window_bounds = array<i64: 8, 512>}]} {
    %c0 = arith.constant 0 : index
    %c0_0 = arith.constant 0 : index
    %0 = vector.load %arg2[%c0, %c0_0] : memref<8x512xf32, #tpu.memory_space<vmem>>, vector<8x512xf32>
    %c0_1 = arith.constant 0 : index
    %c0_2 = arith.constant 0 : index
    %1 = vector.load %arg3[%c0_1, %c0_2] : memref<8x1xf32, #tpu.memory_space<vmem>>, vector<8x1xf32>
    %2 = vector.broadcast %1 : vector<8x1xf32> to vector<8x512xf32>
    %3 = arith.mulf %0, %2 : vector<8x512xf32>
    %c0_3 = arith.constant 0 : index
    %c0_4 = arith.constant 0 : index
    %4 = vector.load %arg4[%c0_3, %c0_4] : memref<8x512xf32, #tpu.memory_space<vmem>>, vector<8x512xf32>
    tpu.vector_store %arg4[%c0_3, %c0_4], %3 {strides = array<i32>} : memref<8x512xf32, #tpu.memory_space<vmem>>, vector<8x512xf32>,
    return
  }
  func.func @transform_0(%arg0: i32, %arg1: i32) -> (i32, i32) {
    %c0_i32 = arith.constant 0 : i32
    return %arg0, %arg1 : i32, i32
  }
  func.func @transform_1(%arg0: i32, %arg1: i32) -> (i32, i32) {
    %c0_i32 = arith.constant 0 : i32
    %c0_i32_0 = arith.constant 0 : i32
    return %arg0, %c0_i32 : i32, i32
  }
  func.func @transform_2(%arg0: i32, %arg1: i32) -> (i32, i32) {
    %c0_i32 = arith.constant 0 : i32
    return %arg0, %arg1 : i32, i32
  }
}

</mosaic_0001>

<llo_original>
// kernel: tpu_custom_call.1
$region0: #{tpu_custom_call.1}
  #allocation0 [shape = 'u32[]', space=smem, size = 0x4, offset = 0x4, fixed_abs, tag = 'smem constant byte address 0x4 - core index']
  #allocation1 [shape = 'u32[144,128]{1,0:T(1,128)}', space=vmem, size = 0x12000, scoped, tag = 'internal scratch']
  %s0 = inlined_call_operand.hbm [shape: f32[8,512], index: 0, kind: input, shape index: {}]
  %s1 = inlined_call_operand.vmem [shape: f32[8,1], index: 1, kind: input, shape index: {}]
  %s2 = inlined_call_operand.hbm [shape: f32[8,512], index: 2, kind: output, shape index: {}]
  %s3 = sld [smem:[#allocation0]]
  $region22: #{tpu_custom_call.1} parent=0
    _
  %s5 = ssub.s32 1, %s3
  %s6 = scalar_select 0, %s5, %s3
  $region1: #{tpu_custom_call.1} parent=0
    #allocation2 [shape = 'u8[16384]{0}', space=vmem, size = 0x4000, scoped, tag = 'input window, operand 0, single buffered']
    #allocation3 [shape = 's32[1]{0}', space=sflag, size = 0x4, scoped, tag = 'scoped memory for tpu_custom_call.1']
    #allocation4 [shape = 's32[1]{0}', space=sflag, size = 0x4, scoped, tag = 'scoped memory for tpu_custom_call.1']
    #allocation5 [shape = 'u8[16384]{0}', space=vmem, size = 0x4000, scoped, tag = 'output window, operand 0, single buffered']
    %7 = vsyncpa [#allocation3], 0
    %8 = vsyncpa [#allocation4], 0
    // Predicated region
    $region2: #{tpu_custom_call.1} parent=1 // pred_check
      _
    $region3: #{tpu_custom_call.1} parent=1 // pred_check_branch
      %10 = sbr.rel (0) target = $region5
    $region4: #{tpu_custom_call.1} parent=1 // pred_region
      %s12 = ssub.s32 512, 512
      %13 = vsyncadd [#allocation3], %s12
      %s15 = sshll.u32 [#allocation2], 4
      %s16 = int_to_ptr.vmem [resolvable:$true] %s15
      %18 = dma.hbm_to_vmem [thread:$0]  %s0, 512, %s16, [#allocation3]
    $region5: #{tpu_custom_call.1} parent=1 // pred_fallthru
      _
    // Predicated region
    $region6: #{tpu_custom_call.1} parent=1 // pred_check
      _
    $region7: #{tpu_custom_call.1} parent=1 // pred_check_branch
      %20 = sbr.rel (0) target = $region9
    $region8: #{tpu_custom_call.1} parent=1 // pred_region
      _
    $region9: #{tpu_custom_call.1} parent=1 // pred_fallthru
      _
    // Predicated region
    $region10: #{tpu_custom_call.1} parent=1 // pred_check
      _
    $region11: #{tpu_custom_call.1} parent=1 // pred_check_branch
      %22 = sbr.rel (0) target = $region13
    $region12: #{tpu_custom_call.1} parent=1 // pred_region
      %23 = dma.done [#allocation3], 512
    $region13: #{tpu_custom_call.1} parent=1 // pred_fallthru
      _
    %v24 = vld [vmem:[#allocation2] sm:$0xff]
    %v25 = vld [vmem:[#allocation2 + $0x8] sm:$0xff]
    %v26 = vld [vmem:[#allocation2 + $0x10] sm:$0xff]
    %v27 = vld [vmem:[#allocation2 + $0x18] sm:$0xff]
    %v28 = vld [vmem:[%s1] sm:$0xff]
    %30 = vset.pattern.permute.xlu0 0
    %31 = vperm.xlu0 %30, %v28
    %v32 = vpop.permute.xlu0 %31
    %v34 = vmul.f32 %v24, %v32
    %v35 = vmul.f32 %v25, %v32
    %v36 = vmul.f32 %v26, %v32
    %v37 = vmul.f32 %v27, %v32
    %38 = vst [vmem:[#allocation5] sm:$0xff] %v34
    %39 = vst [vmem:[#allocation5 + $0x8] sm:$0xff] %v35
    %40 = vst [vmem:[#allocation5 + $0x10] sm:$0xff] %v36
    %41 = vst [vmem:[#allocation5 + $0x18] sm:$0xff] %v37
    // Predicated region
    $region14: #{tpu_custom_call.1} parent=1 // pred_check
      _
    $region15: #{tpu_custom_call.1} parent=1 // pred_check_branch
      %43 = sbr.rel (0) target = $region17
    $region16: #{tpu_custom_call.1} parent=1 // pred_region
      %s45 = ssub.s32 512, 512
      %46 = vsyncadd [#allocation4], %s45
      %s48 = sshll.u32 [#allocation5], 4
      %s49 = int_to_ptr.vmem [resolvable:$true] %s48
      %51 = dma.vmem_to_hbm [thread:$0]  %s49, 512, %s2, [#allocation4]
    $region17: #{tpu_custom_call.1} parent=1 // pred_fallthru
      _
    // Predicated region
    $region18: #{tpu_custom_call.1} parent=1 // pred_check
      _
    $region19: #{tpu_custom_call.1} parent=1 // pred_check_branch
      %53 = sbr.rel (0) target = $region21
    $region20: #{tpu_custom_call.1} parent=1 // pred_region
      %54 = dma.done [#allocation4], 512
    $region21: #{tpu_custom_call.1} parent=1 // pred_fallthru
      _
    %55 = vsyncpa [#allocation3], 1
    %56 = vsyncpa [#allocation4], 1

</llo_original>
